<compile_context>
chip_gen: v6e
topology: v6e:2x2x1
jax: 0.10.0
libtpu: 0.0.40
codegen_flags: <defaults>
</compile_context>

<pallas_src>
import functools
import math

import jax
import jax.numpy as jnp
from jax import lax
from jax.experimental import pallas as pl
from jax.experimental.pallas import tpu as pltpu


# --------------------------------------------------------------------------
# Helpers
# --------------------------------------------------------------------------
def _pair(v):
    if isinstance(v, int):
        return (v, v)
    v = tuple(v)
    if len(v) == 1:
        return (v[0], v[0])
    return (v[0], v[1])


def _same_pad_amounts(H, W, KH, KW, SH, SW):
    extra_h = (math.ceil(W / SW) - 1) * SW - W + KW
    extra_v = (math.ceil(H / SH) - 1) * SH - H + KH
    left = extra_h // 2
    right = extra_h - left
    top = extra_v // 2
    bottom = extra_v - top
    return top, bottom, left, right


def _vmem_capacity_bytes():
    """Per-TensorCore VMEM capacity; conservative fallback (v7x) if unknown."""
    try:
        return int(pltpu.get_tpu_info().vmem_capacity_bytes)
    except Exception:
        return 64 << 20


def _choose_c_tile(B, K, itemsize, budget_bytes, *, in_elems, out_elems,
                   slab_elems):
    """Pick a lane-dense (multiple-of-128) channel tile.

    Per-step VMEM footprint counted: 2x input block + 2x output block (double
    buffering), the zero-padded scratch slab, and ~3 output-sized temporaries
    for the unrolled KH*KW taps (slices are not views).  Prefers >= 2 total
    grid steps so v7x's two TensorCores both get work and the output writeback
    of step i-1 can overlap the input DMA of step i.
    """
    def step_bytes(c):
        return itemsize * c * (2 * in_elems + 2 * out_elems
                               + slab_elems + 3 * out_elems)

    k_pad = pl.cdiv(K, 128) * 128
    cands = [c for c in (2048, 1024, 512, 384, 256, 128)
             if c <= k_pad and step_bytes(c) <= budget_bytes]
    if not cands:
        # TODO(synk): tile over output rows (overlapping-halo input blocks) for
        # very large spatial planes where even a 128-lane tile blows the budget.
        return 128
    multi = [c for c in cands if B * pl.cdiv(K, c) >= 2]
    if multi:
        even = [c for c in multi if K % c == 0]
        return (even or multi)[0]
    return cands[0]


# --------------------------------------------------------------------------
# Kernel
# --------------------------------------------------------------------------
def _maxpool_same_kernel(x_ref, o_ref, xp_ref, *, KH, KW, SH, SW, HO, WO,
                         top, left, H, W):
    # x_ref : (H,  W,  C_TILE)   unpadded input block, channels on lanes
    # o_ref : (HO, WO, C_TILE)   pooled output block (lane-dense store)
    # xp_ref: (Hp, Wp_r, C_TILE) VMEM scratch holding the zero-padded slab
    #
    # Fused SAME zero-pad: zero the slab, drop the input block into its
    # interior.  Pure VMEM traffic, hidden under the HBM DMAs.
    xp_ref[...] = jnp.zeros_like(xp_ref)
    xp_ref[top:top + H, left:left + W, :] = x_ref[...]

    acc = None
    for kh in range(KH):                        # static unroll: the KH*KW max
        for kw in range(KW):                    # ops are free VPU filler under
            v = xp_ref[pl.ds(kh, HO, stride=SH),   # the DMAs (mem-bound kernel)
                       pl.ds(kw, WO, stride=SW), :]
            acc = v if acc is None else jnp.maximum(acc, v)
    o_ref[...] = acc


# --------------------------------------------------------------------------
# Core (channels-last) entry
# --------------------------------------------------------------------------
def _maxpool2d_same_core(x, kernel_size, stride):
    """x: (B, H, W, K) channels-last.  Returns (B, HO, WO, K)."""
    KH, KW = kernel_size
    SH, SW = stride
    B, H, W, K = x.shape

    top, bottom, left, right = _same_pad_amounts(H, W, KH, KW, SH, SW)
    Hp, Wp = H + top + bottom, W + left + right
    HO = (Hp - KH) // SH + 1
    WO = (Wp - KW) // SW + 1

    itemsize = jnp.dtype(x.dtype).itemsize
    # Round the padded width (sublane axis of the scratch slab) up to a packing
    # multiple; the extra zero columns are never read by any window tap.
    sub = {4: 8, 2: 16, 1: 32}.get(itemsize, 8)
    Wp_r = pl.cdiv(Wp, sub) * sub

    vmem_cap = _vmem_capacity_bytes()
    budget = vmem_cap // 3                     # generation-aware block budget
    c_tile = _choose_c_tile(B, K, itemsize, budget,
                            in_elems=H * W, out_elems=HO * WO,
                            slab_elems=Hp * Wp_r)
    k_tiles = pl.cdiv(K, c_tile)               # ragged tail handled by masking

    kernel = functools.partial(_maxpool_same_kernel, KH=KH, KW=KW, SH=SH,
                               SW=SW, HO=HO, WO=WO, top=top, left=left,
                               H=H, W=W)
    return pl.pallas_call(
        kernel,
        out_shape=jax.ShapeDtypeStruct((B, HO, WO, K), x.dtype),
        grid_spec=pltpu.PrefetchScalarGridSpec(
            num_scalar_prefetch=0,
            grid=(B, k_tiles),
            in_specs=[pl.BlockSpec((None, H, W, c_tile),
                                   lambda b, j: (b, 0, 0, j))],
            out_specs=pl.BlockSpec((None, HO, WO, c_tile),
                                   lambda b, j: (b, 0, 0, j)),
            scratch_shapes=[pltpu.VMEM((Hp, Wp_r, c_tile), x.dtype)]),
        compiler_params=pltpu.CompilerParams(
            dimension_semantics=("parallel", "parallel"),
            vmem_limit_bytes=int(vmem_cap * 3 // 4)),
    )(x)


# --------------------------------------------------------------------------
# Public wrappers
# --------------------------------------------------------------------------
def maxpool2d_same_nhwc(x, kernel_size=3, stride=None):
    """Recommended entry point for NHWC pipelines: (N,H,W,C) -> (N,HO,WO,C)
    with zero layout transposes (channels stay on lanes end-to-end)."""
    kernel_size = _pair(kernel_size)
    stride = _pair(stride) if stride is not None else kernel_size
    return _maxpool2d_same_core(x, kernel_size, stride)


def maxpool2d_static_same_padding(x, kernel_size=3, stride=None):
    """NCHW-in / NCHW-out wrapper matching MaxPool2dStaticSamePadding.forward.

    NHWC callers should use maxpool2d_same_nhwc instead and skip both layout
    transposes below (each is a full HBM round trip on a mem-bound op)."""
    kernel_size = _pair(kernel_size)
    stride = _pair(stride) if stride is not None else kernel_size
    N, C, H, W = x.shape
    # Fold N*C onto the lane axis: maximises lane density with no padding copy.
    x_cl = jnp.transpose(x, (2, 3, 0, 1)).reshape(1, H, W, N * C)
    out = _maxpool2d_same_core(x_cl, kernel_size, stride)
    _, HO, WO, _ = out.shape
    return jnp.transpose(out.reshape(HO, WO, N, C), (2, 3, 0, 1))


# --------------------------------------------------------------------------
# Pure-JAX references (pad with zeros, then valid max-pool)
# --------------------------------------------------------------------------
def _reference_nchw(x, kernel_size=3, stride=2):
    KH, KW = _pair(kernel_size)
    SH, SW = _pair(stride)
    N, C, H, W = x.shape
    top, bottom, left, right = _same_pad_amounts(H, W, KH, KW, SH, SW)
    xp = jnp.pad(x, ((0, 0), (0, 0), (top, bottom), (left, right)))
    init = jnp.array(-jnp.inf, dtype=x.dtype)
    return lax.reduce_window(xp, init, lax.max,
                             window_dimensions=(1, 1, KH, KW),
                             window_strides=(1, 1, SH, SW), padding="VALID")


def _reference_nhwc(x, kernel_size=3, stride=2):
    KH, KW = _pair(kernel_size)
    SH, SW = _pair(stride)
    N, H, W, C = x.shape
    top, bottom, left, right = _same_pad_amounts(H, W, KH, KW, SH, SW)
    xp = jnp.pad(x, ((0, 0), (top, bottom), (left, right), (0, 0)))
    init = jnp.array(-jnp.inf, dtype=x.dtype)
    return lax.reduce_window(xp, init, lax.max,
                             window_dimensions=(1, KH, KW, 1),
                             window_strides=(1, SH, SW, 1), padding="VALID")


# --------------------------------------------------------------------------
if __name__ == "__main__":
    # 1) Small NCHW sanity shape consistent with the module (no learnable params).
    x = jax.random.normal(jax.random.PRNGKey(0), (2, 4, 16, 16),
                          dtype=jnp.float32)
    out = jax.block_until_ready(maxpool2d_static_same_padding(x, 3, 2))
    assert out.shape == (2, 4, 8, 8), out.shape
    assert jnp.allclose(out, _reference_nchw(x, 3, 2)), "mismatch (2,4,16,16) f32"

    # 2) Lane-dense multi-tile grid path (N*C=1024 -> 512-lane tiles, >=2 grid
    #    steps for v7x megacore), bf16 kept end-to-end (max needs no f32 acc).
    xb = jax.random.normal(jax.random.PRNGKey(1), (4, 256, 16, 16),
                           dtype=jnp.bfloat16)
    ob = jax.block_until_ready(maxpool2d_static_same_padding(xb, 3, 2))
    assert ob.shape == (4, 256, 8, 8), ob.shape
    assert jnp.array_equal(ob, _reference_nchw(xb, 3, 2)), "mismatch bf16 tiled"

    # 3) Odd spatial dims -> asymmetric SAME padding; ragged lane tail (N*C=96)
    #    exercises the masked boundary-block path (no channel-pad HBM copy).
    xo = jax.random.normal(jax.random.PRNGKey(2), (2, 48, 15, 17),
                           dtype=jnp.float32)
    oo = jax.block_until_ready(maxpool2d_static_same_padding(xo, 3, 2))
    assert oo.shape == (2, 48, 8, 9), oo.shape
    assert jnp.allclose(oo, _reference_nchw(xo, 3, 2)), "mismatch odd-shape f32"

    # 4) NHWC fast path: no layout transposes at all (recommended entry point).
    xn = jax.random.normal(jax.random.PRNGKey(3), (2, 16, 16, 128),
                           dtype=jnp.float32)
    on = jax.block_until_ready(maxpool2d_same_nhwc(xn, 3, 2))
    assert on.shape == (2, 8, 8, 128), on.shape
    assert jnp.allclose(on, _reference_nhwc(xn, 3, 2)), "mismatch NHWC f32"

    print("KERNEL_OK")
</pallas_src>

<mosaic_0001>
module attributes {stable_mosaic.version = 11 : i64} {
  func.func @_maxpool_same_kernel(%arg0: i32, %arg1: i32, %arg2: memref<1x16x16x128xf32, #tpu.memory_space<vmem>>, %arg3: memref<1x8x8x128xf32, #tpu.memory_space<vmem>>, %arg4: memref<17x24x128xf32, #tpu.memory_space<vmem>>) attributes {dimension_semantics = [#tpu.dimension_semantics<parallel>, #tpu.dimension_semantics<parallel>], iteration_bounds = array<i64: 1, 1>, scalar_prefetch = 0 : i64, scratch_operands = 1 : i64, tpu.core_type = #tpu.core_type<tc>, window_params = [{transform_indices = @transform_0, window_bounds = array<i64: 1, 16, 16, 128>}, {transform_indices = @transform_1, window_bounds = array<i64: 1, 8, 8, 128>}]} {
    %cst = arith.constant 0.000000e+00 : f32
    %0 = vector.broadcast %cst : f32 to vector<17x24x128xf32>
    %c0 = arith.constant 0 : index
    %c0_0 = arith.constant 0 : index
    %c0_1 = arith.constant 0 : index
    %1 = vector.load %arg4[%c0, %c0_0, %c0_1] : memref<17x24x128xf32, #tpu.memory_space<vmem>>, vector<17x24x128xf32>
    tpu.vector_store %arg4[%c0, %c0_0, %c0_1], %0 {strides = array<i32>} : memref<17x24x128xf32, #tpu.memory_space<vmem>>, vector<17x24x128xf32>,
    %c0_2 = arith.constant 0 : index
    %c0_3 = arith.constant 0 : index
    %c0_4 = arith.constant 0 : index
    %c0_5 = arith.constant 0 : index
    %2 = vector.load %arg2[%c0_2, %c0_3, %c0_4, %c0_5] : memref<1x16x16x128xf32, #tpu.memory_space<vmem>>, vector<1x16x16x128xf32>
    %3 = vector.shape_cast %2 : vector<1x16x16x128xf32> to vector<16x16x128xf32>
    %c0_6 = arith.constant 0 : index
    %c0_7 = arith.constant 0 : index
    %c0_8 = arith.constant 0 : index
    %4 = vector.load %arg4[%c0_6, %c0_7, %c0_8] : memref<17x24x128xf32, #tpu.memory_space<vmem>>, vector<16x16x128xf32>
    tpu.vector_store %arg4[%c0_6, %c0_7, %c0_8], %3 {strides = array<i32>} : memref<17x24x128xf32, #tpu.memory_space<vmem>>, vector<16x16x128xf32>,
    %c0_9 = arith.constant 0 : index
    %c0_10 = arith.constant 0 : index
    %c0_11 = arith.constant 0 : index
    %5 = tpu.strided_load %arg4[%c0_9, %c0_10, %c0_11] {strides = array<i32: 2, 2, 1>} : memref<17x24x128xf32, #tpu.memory_space<vmem>>, vector<8x8x128xf32>
    %c0_12 = arith.constant 0 : index
    %c1 = arith.constant 1 : index
    %c0_13 = arith.constant 0 : index
    %6 = tpu.strided_load %arg4[%c0_12, %c1, %c0_13] {strides = array<i32: 2, 2, 1>} : memref<17x24x128xf32, #tpu.memory_space<vmem>>, vector<8x8x128xf32>
    %7 = arith.maximumf %5, %6 : vector<8x8x128xf32>
    %c0_14 = arith.constant 0 : index
    %c2 = arith.constant 2 : index
    %c0_15 = arith.constant 0 : index
    %8 = tpu.strided_load %arg4[%c0_14, %c2, %c0_15] {strides = array<i32: 2, 2, 1>} : memref<17x24x128xf32, #tpu.memory_space<vmem>>, vector<8x8x128xf32>
    %9 = arith.maximumf %7, %8 : vector<8x8x128xf32>
    %c1_16 = arith.constant 1 : index
    %c0_17 = arith.constant 0 : index
    %c0_18 = arith.constant 0 : index
    %10 = tpu.strided_load %arg4[%c1_16, %c0_17, %c0_18] {strides = array<i32: 2, 2, 1>} : memref<17x24x128xf32, #tpu.memory_space<vmem>>, vector<8x8x128xf32>
    %11 = arith.maximumf %9, %10 : vector<8x8x128xf32>
    %c1_19 = arith.constant 1 : index
    %c1_20 = arith.constant 1 : index
    %c0_21 = arith.constant 0 : index
    %12 = tpu.strided_load %arg4[%c1_19, %c1_20, %c0_21] {strides = array<i32: 2, 2, 1>} : memref<17x24x128xf32, #tpu.memory_space<vmem>>, vector<8x8x128xf32>
    %13 = arith.maximumf %11, %12 : vector<8x8x128xf32>
    %c1_22 = arith.constant 1 : index
    %c2_23 = arith.constant 2 : index
    %c0_24 = arith.constant 0 : index
    %14 = tpu.strided_load %arg4[%c1_22, %c2_23, %c0_24] {strides = array<i32: 2, 2, 1>} : memref<17x24x128xf32, #tpu.memory_space<vmem>>, vector<8x8x128xf32>
    %15 = arith.maximumf %13, %14 : vector<8x8x128xf32>
    %c2_25 = arith.constant 2 : index
    %c0_26 = arith.constant 0 : index
    %c0_27 = arith.constant 0 : index
    %16 = tpu.strided_load %arg4[%c2_25, %c0_26, %c0_27] {strides = array<i32: 2, 2, 1>} : memref<17x24x128xf32, #tpu.memory_space<vmem>>, vector<8x8x128xf32>
    %17 = arith.maximumf %15, %16 : vector<8x8x128xf32>
    %c2_28 = arith.constant 2 : index
    %c1_29 = arith.constant 1 : index
    %c0_30 = arith.constant 0 : index
    %18 = tpu.strided_load %arg4[%c2_28, %c1_29, %c0_30] {strides = array<i32: 2, 2, 1>} : memref<17x24x128xf32, #tpu.memory_space<vmem>>, vector<8x8x128xf32>
    %19 = arith.maximumf %17, %18 : vector<8x8x128xf32>
    %c2_31 = arith.constant 2 : index
    %c2_32 = arith.constant 2 : index
    %c0_33 = arith.constant 0 : index
    %20 = tpu.strided_load %arg4[%c2_31, %c2_32, %c0_33] {strides = array<i32: 2, 2, 1>} : memref<17x24x128xf32, #tpu.memory_space<vmem>>, vector<8x8x128xf32>
    %21 = arith.maximumf %19, %20 : vector<8x8x128xf32>
    %c0_34 = arith.constant 0 : index
    %c0_35 = arith.constant 0 : index
    %c0_36 = arith.constant 0 : index
    %c0_37 = arith.constant 0 : index
    %22 = vector.load %arg3[%c0_34, %c0_35, %c0_36, %c0_37] : memref<1x8x8x128xf32, #tpu.memory_space<vmem>>, vector<1x8x8x128xf32>
    %23 = vector.shape_cast %22 : vector<1x8x8x128xf32> to vector<8x8x128xf32>
    %24 = vector.shape_cast %21 : vector<8x8x128xf32> to vector<1x8x8x128xf32>
    tpu.vector_store %arg3[%c0_34, %c0_35, %c0_36, %c0_37], %24 {strides = array<i32>} : memref<1x8x8x128xf32, #tpu.memory_space<vmem>>, vector<1x8x8x128xf32>,
    return
  }
  func.func @transform_0(%arg0: i32, %arg1: i32) -> (i32, i32, i32, i32) {
    %c0_i32 = arith.constant 0 : i32
    %c0_i32_0 = arith.constant 0 : i32
    %c0_i32_1 = arith.constant 0 : i32
    return %arg0, %c0_i32, %c0_i32_0, %arg1 : i32, i32, i32, i32
  }
  func.func @transform_1(%arg0: i32, %arg1: i32) -> (i32, i32, i32, i32) {
    %c0_i32 = arith.constant 0 : i32
    %c0_i32_0 = arith.constant 0 : i32
    %c0_i32_1 = arith.constant 0 : i32
    return %arg0, %c0_i32, %c0_i32_0, %arg1 : i32, i32, i32, i32
  }
}

</mosaic_0001>

<llo_original>
// kernel: tpu_custom_call.1
$region0: #{tpu_custom_call.1}
  #allocation0 [shape = 'u32[]', space=smem, size = 0x4, offset = 0x4, fixed_abs, tag = 'smem constant byte address 0x4 - core index']
  #allocation1 [shape = 'u32[144,128]{1,0:T(1,128)}', space=vmem, size = 0x12000, scoped, tag = 'internal scratch']
  #allocation2 [shape = 'f32[17,24,128]{2,1,0:T(8,128)}', space=vmem, size = 0x33000, scoped, tag = 'scratch operand']
  %s0 = inlined_call_operand.vmem [shape: f32[1,16,16,8], index: 0, kind: input, shape index: {}]
  %s1 = inlined_call_operand.hbm [shape: f32[1,8,8,8], index: 1, kind: output, shape index: {}]
  %s2 = sld [smem:[#allocation0]]
  $region14: #{tpu_custom_call.1} parent=0
    _
  %s4 = ssub.s32 1, %s2
  %s5 = scalar_select 0, %s4, %s2
  $region1: #{tpu_custom_call.1} parent=0
    #allocation3 [shape = 'u8[32768]{0}', space=vmem, size = 0x8000, scoped, tag = 'output window, operand 0, single buffered']
    #allocation4 [shape = 's32[1]{0}', space=sflag, size = 0x4, scoped, tag = 'scoped memory for tpu_custom_call.1']
    %6 = vsyncpa [#allocation4], 0
    // Predicated region
    $region2: #{tpu_custom_call.1} parent=1 // pred_check
      _
    $region3: #{tpu_custom_call.1} parent=1 // pred_check_branch
      %8 = sbr.rel (0) target = $region5
    $region4: #{tpu_custom_call.1} parent=1 // pred_region
      _
    $region5: #{tpu_custom_call.1} parent=1 // pred_fallthru
      _
    %9 = vst [vmem:[#allocation2] sm:$0xff] 0.0
    %10 = vst [vmem:[#allocation2 + $0x8] sm:$0xff] 0.0
    %11 = vst [vmem:[#allocation2 + $0x10] sm:$0xff] 0.0
    %12 = vst [vmem:[#allocation2 + $0x18] sm:$0xff] 0.0
    %13 = vst [vmem:[#allocation2 + $0x20] sm:$0xff] 0.0
    %14 = vst [vmem:[#allocation2 + $0x28] sm:$0xff] 0.0
    %15 = vst [vmem:[#allocation2 + $0x30] sm:$0xff] 0.0
    %16 = vst [vmem:[#allocation2 + $0x38] sm:$0xff] 0.0
    %17 = vst [vmem:[#allocation2 + $0x40] sm:$0xff] 0.0
    %18 = vst [vmem:[#allocation2 + $0x48] sm:$0xff] 0.0
    %19 = vst [vmem:[#allocation2 + $0x50] sm:$0xff] 0.0
    %20 = vst [vmem:[#allocation2 + $0x58] sm:$0xff] 0.0
    %21 = vst [vmem:[#allocation2 + $0x60] sm:$0xff] 0.0
    %22 = vst [vmem:[#allocation2 + $0x68] sm:$0xff] 0.0
    %23 = vst [vmem:[#allocation2 + $0x70] sm:$0xff] 0.0
    %24 = vst [vmem:[#allocation2 + $0x78] sm:$0xff] 0.0
    %25 = vst [vmem:[#allocation2 + $0x80] sm:$0xff] 0.0
    %26 = vst [vmem:[#allocation2 + $0x88] sm:$0xff] 0.0
    %27 = vst [vmem:[#allocation2 + $0x90] sm:$0xff] 0.0
    %28 = vst [vmem:[#allocation2 + $0x98] sm:$0xff] 0.0
    %29 = vst [vmem:[#allocation2 + $0xa0] sm:$0xff] 0.0
    %30 = vst [vmem:[#allocation2 + $0xa8] sm:$0xff] 0.0
    %31 = vst [vmem:[#allocation2 + $0xb0] sm:$0xff] 0.0
    %32 = vst [vmem:[#allocation2 + $0xb8] sm:$0xff] 0.0
    %33 = vst [vmem:[#allocation2 + $0xc0] sm:$0xff] 0.0
    %34 = vst [vmem:[#allocation2 + $0xc8] sm:$0xff] 0.0
    %35 = vst [vmem:[#allocation2 + $0xd0] sm:$0xff] 0.0
    %36 = vst [vmem:[#allocation2 + $0xd8] sm:$0xff] 0.0
    %37 = vst [vmem:[#allocation2 + $0xe0] sm:$0xff] 0.0
    %38 = vst [vmem:[#allocation2 + $0xe8] sm:$0xff] 0.0
    %39 = vst [vmem:[#allocation2 + $0xf0] sm:$0xff] 0.0
    %40 = vst [vmem:[#allocation2 + $0xf8] sm:$0xff] 0.0
    %41 = vst [vmem:[#allocation2 + $0x100] sm:$0xff] 0.0
    %42 = vst [vmem:[#allocation2 + $0x108] sm:$0xff] 0.0
    %43 = vst [vmem:[#allocation2 + $0x110] sm:$0xff] 0.0
    %44 = vst [vmem:[#allocation2 + $0x118] sm:$0xff] 0.0
    %45 = vst [vmem:[#allocation2 + $0x120] sm:$0xff] 0.0
    %46 = vst [vmem:[#allocation2 + $0x128] sm:$0xff] 0.0
    %47 = vst [vmem:[#allocation2 + $0x130] sm:$0xff] 0.0
    %48 = vst [vmem:[#allocation2 + $0x138] sm:$0xff] 0.0
    %49 = vst [vmem:[#allocation2 + $0x140] sm:$0xff] 0.0
    %50 = vst [vmem:[#allocation2 + $0x148] sm:$0xff] 0.0
    %51 = vst [vmem:[#allocation2 + $0x150] sm:$0xff] 0.0
    %52 = vst [vmem:[#allocation2 + $0x158] sm:$0xff] 0.0
    %53 = vst [vmem:[#allocation2 + $0x160] sm:$0xff] 0.0
    %54 = vst [vmem:[#allocation2 + $0x168] sm:$0xff] 0.0
    %55 = vst [vmem:[#allocation2 + $0x170] sm:$0xff] 0.0
    %56 = vst [vmem:[#allocation2 + $0x178] sm:$0xff] 0.0
    %57 = vst [vmem:[#allocation2 + $0x180] sm:$0xff] 0.0
    %58 = vst [vmem:[#allocation2 + $0x188] sm:$0xff] 0.0
    %59 = vst [vmem:[#allocation2 + $0x190] sm:$0xff] 0.0
    %v60 = vld [vmem:[%s0] sm:$0xff]
    %v61 = vld [vmem:[%s0 + $0x8] sm:$0xff]
    %v62 = vld [vmem:[%s0 + $0x10] sm:$0xff]
    %v63 = vld [vmem:[%s0 + $0x18] sm:$0xff]
    %v64 = vld [vmem:[%s0 + $0x20] sm:$0xff]
    %v65 = vld [vmem:[%s0 + $0x28] sm:$0xff]
    %v66 = vld [vmem:[%s0 + $0x30] sm:$0xff]
    %v67 = vld [vmem:[%s0 + $0x38] sm:$0xff]
    %v68 = vld [vmem:[%s0 + $0x40] sm:$0xff]
    %v69 = vld [vmem:[%s0 + $0x48] sm:$0xff]
    %v70 = vld [vmem:[%s0 + $0x50] sm:$0xff]
    %v71 = vld [vmem:[%s0 + $0x58] sm:$0xff]
    %v72 = vld [vmem:[%s0 + $0x60] sm:$0xff]
    %v73 = vld [vmem:[%s0 + $0x68] sm:$0xff]
    %v74 = vld [vmem:[%s0 + $0x70] sm:$0xff]
    %v75 = vld [vmem:[%s0 + $0x78] sm:$0xff]
    %v76 = vld [vmem:[%s0 + $0x80] sm:$0xff]
    %v77 = vld [vmem:[%s0 + $0x88] sm:$0xff]
    %v78 = vld [vmem:[%s0 + $0x90] sm:$0xff]
    %v79 = vld [vmem:[%s0 + $0x98] sm:$0xff]
    %v80 = vld [vmem:[%s0 + $0xa0] sm:$0xff]
    %v81 = vld [vmem:[%s0 + $0xa8] sm:$0xff]
    %v82 = vld [vmem:[%s0 + $0xb0] sm:$0xff]
    %v83 = vld [vmem:[%s0 + $0xb8] sm:$0xff]
    %v84 = vld [vmem:[%s0 + $0xc0] sm:$0xff]
    %v85 = vld [vmem:[%s0 + $0xc8] sm:$0xff]
    %v86 = vld [vmem:[%s0 + $0xd0] sm:$0xff]
    %v87 = vld [vmem:[%s0 + $0xd8] sm:$0xff]
    %v88 = vld [vmem:[%s0 + $0xe0] sm:$0xff]
    %v89 = vld [vmem:[%s0 + $0xe8] sm:$0xff]
    %v90 = vld [vmem:[%s0 + $0xf0] sm:$0xff]
    %v91 = vld [vmem:[%s0 + $0xf8] sm:$0xff]
    %92 = vst [vmem:[#allocation2] sm:$0xff] %v60
    %93 = vst [vmem:[#allocation2 + $0x8] sm:$0xff] %v61
    %94 = vst [vmem:[#allocation2 + $0x18] sm:$0xff] %v62
    %95 = vst [vmem:[#allocation2 + $0x20] sm:$0xff] %v63
    %96 = vst [vmem:[#allocation2 + $0x30] sm:$0xff] %v64
    %97 = vst [vmem:[#allocation2 + $0x38] sm:$0xff] %v65
    %98 = vst [vmem:[#allocation2 + $0x48] sm:$0xff] %v66
    %99 = vst [vmem:[#allocation2 + $0x50] sm:$0xff] %v67
    %100 = vst [vmem:[#allocation2 + $0x60] sm:$0xff] %v68
    %101 = vst [vmem:[#allocation2 + $0x68] sm:$0xff] %v69
    %102 = vst [vmem:[#allocation2 + $0x78] sm:$0xff] %v70
    %103 = vst [vmem:[#allocation2 + $0x80] sm:$0xff] %v71
    %104 = vst [vmem:[#allocation2 + $0x90] sm:$0xff] %v72
    %105 = vst [vmem:[#allocation2 + $0x98] sm:$0xff] %v73
    %106 = vst [vmem:[#allocation2 + $0xa8] sm:$0xff] %v74
    %107 = vst [vmem:[#allocation2 + $0xb0] sm:$0xff] %v75
    %108 = vst [vmem:[#allocation2 + $0xc0] sm:$0xff] %v76
    %109 = vst [vmem:[#allocation2 + $0xc8] sm:$0xff] %v77
    %110 = vst [vmem:[#allocation2 + $0xd8] sm:$0xff] %v78
    %111 = vst [vmem:[#allocation2 + $0xe0] sm:$0xff] %v79
    %112 = vst [vmem:[#allocation2 + $0xf0] sm:$0xff] %v80
    %113 = vst [vmem:[#allocation2 + $0xf8] sm:$0xff] %v81
    %114 = vst [vmem:[#allocation2 + $0x108] sm:$0xff] %v82
    %115 = vst [vmem:[#allocation2 + $0x110] sm:$0xff] %v83
    %116 = vst [vmem:[#allocation2 + $0x120] sm:$0xff] %v84
    %117 = vst [vmem:[#allocation2 + $0x128] sm:$0xff] %v85
    %118 = vst [vmem:[#allocation2 + $0x138] sm:$0xff] %v86
    %119 = vst [vmem:[#allocation2 + $0x140] sm:$0xff] %v87
    %120 = vst [vmem:[#allocation2 + $0x150] sm:$0xff] %v88
    %121 = vst [vmem:[#allocation2 + $0x158] sm:$0xff] %v89
    %122 = vst [vmem:[#allocation2 + $0x168] sm:$0xff] %v90
    %123 = vst [vmem:[#allocation2 + $0x170] sm:$0xff] %v91
    %v124 = vld [vmem:[#allocation2] ss:$2 sm:$0xff]
    %s125 = scalar_lea.vmem [#allocation2], 48
    %v126 = vld [vmem:[%s125] ss:$2 sm:$0xff]
    %s127 = scalar_lea.vmem [#allocation2], 96
    %v128 = vld [vmem:[%s127] ss:$2 sm:$0xff]
    %s129 = scalar_lea.vmem [#allocation2], 144
    %v130 = vld [vmem:[%s129] ss:$2 sm:$0xff]
    %s131 = scalar_lea.vmem [#allocation2], 192
    %v132 = vld [vmem:[%s131] ss:$2 sm:$0xff]
    %s133 = scalar_lea.vmem [#allocation2], 240
    %v134 = vld [vmem:[%s133] ss:$2 sm:$0xff]
    %s135 = scalar_lea.vmem [#allocation2], 288
    %v136 = vld [vmem:[%s135] ss:$2 sm:$0xff]
    %s137 = scalar_lea.vmem [#allocation2], 336
    %v138 = vld [vmem:[%s137] ss:$2 sm:$0xff]
    %s139 = scalar_lea.vmem [#allocation2], 1
    %v140 = vld [vmem:[%s139] ss:$2 sm:$0xff]
    %s141 = scalar_lea.vmem [#allocation2], 49
    %v142 = vld [vmem:[%s141] ss:$2 sm:$0xff]
    %s143 = scalar_lea.vmem [#allocation2], 97
    %v144 = vld [vmem:[%s143] ss:$2 sm:$0xff]
    %s145 = scalar_lea.vmem [#allocation2], 145
    %v146 = vld [vmem:[%s145] ss:$2 sm:$0xff]
    %s147 = scalar_lea.vmem [#allocation2], 193
    %v148 = vld [vmem:[%s147] ss:$2 sm:$0xff]
    %s149 = scalar_lea.vmem [#allocation2], 241
    %v150 = vld [vmem:[%s149] ss:$2 sm:$0xff]
    %s151 = scalar_lea.vmem [#allocation2], 289
    %v152 = vld [vmem:[%s151] ss:$2 sm:$0xff]
    %s153 = scalar_lea.vmem [#allocation2], 337
    %v154 = vld [vmem:[%s153] ss:$2 sm:$0xff]
    %v155 = vmax.f32 %v124, %v140
    %v156 = vmax.f32 %v126, %v142
    %v157 = vmax.f32 %v128, %v144
    %v158 = vmax.f32 %v130, %v146
    %v159 = vmax.f32 %v132, %v148
    %v160 = vmax.f32 %v134, %v150
    %v161 = vmax.f32 %v136, %v152
    %v162 = vmax.f32 %v138, %v154
    %s163 = scalar_lea.vmem [#allocation2], 2
    %v164 = vld [vmem:[%s163] ss:$2 sm:$0xff]
    %s165 = scalar_lea.vmem [#allocation2], 50
    %v166 = vld [vmem:[%s165] ss:$2 sm:$0xff]
    %s167 = scalar_lea.vmem [#allocation2], 98
    %v168 = vld [vmem:[%s167] ss:$2 sm:$0xff]
    %s169 = scalar_lea.vmem [#allocation2], 146
    %v170 = vld [vmem:[%s169] ss:$2 sm:$0xff]
    %s171 = scalar_lea.vmem [#allocation2], 194
    %v172 = vld [vmem:[%s171] ss:$2 sm:$0xff]
    %s173 = scalar_lea.vmem [#allocation2], 242
    %v174 = vld [vmem:[%s173] ss:$2 sm:$0xff]
    %s175 = scalar_lea.vmem [#allocation2], 290
    %v176 = vld [vmem:[%s175] ss:$2 sm:$0xff]
    %s177 = scalar_lea.vmem [#allocation2], 338
    %v178 = vld [vmem:[%s177] ss:$2 sm:$0xff]
    %v179 = vmax.f32 %v155, %v164
    %v180 = vmax.f32 %v156, %v166
    %v181 = vmax.f32 %v157, %v168
    %v182 = vmax.f32 %v158, %v170
    %v183 = vmax.f32 %v159, %v172
    %v184 = vmax.f32 %v160, %v174
    %v185 = vmax.f32 %v161, %v176
    %v186 = vmax.f32 %v162, %v178
    %s187 = scalar_lea.vmem [#allocation2], 24
    %v188 = vld [vmem:[%s187] ss:$2 sm:$0xff]
    %s189 = scalar_lea.vmem %s187, 48 [#allocation2]
    %v190 = vld [vmem:[%s189] ss:$2 sm:$0xff]
    %s191 = scalar_lea.vmem %s187, 96 [#allocation2]
    %v192 = vld [vmem:[%s191] ss:$2 sm:$0xff]
    %s193 = scalar_lea.vmem %s187, 144 [#allocation2]
    %v194 = vld [vmem:[%s193] ss:$2 sm:$0xff]
    %s195 = scalar_lea.vmem %s187, 192 [#allocation2]
    %v196 = vld [vmem:[%s195] ss:$2 sm:$0xff]
    %s197 = scalar_lea.vmem %s187, 240 [#allocation2]
    %v198 = vld [vmem:[%s197] ss:$2 sm:$0xff]
    %s199 = scalar_lea.vmem %s187, 288 [#allocation2]
    %v200 = vld [vmem:[%s199] ss:$2 sm:$0xff]
    %s201 = scalar_lea.vmem %s187, 336 [#allocation2]
    %v202 = vld [vmem:[%s201] ss:$2 sm:$0xff]
    %v203 = vmax.f32 %v179, %v188
    %v204 = vmax.f32 %v180, %v190
    %v205 = vmax.f32 %v181, %v192
    %v206 = vmax.f32 %v182, %v194
    %v207 = vmax.f32 %v183, %v196
    %v208 = vmax.f32 %v184, %v198
    %v209 = vmax.f32 %v185, %v200
    %v210 = vmax.f32 %v186, %v202
    %s211 = scalar_lea.vmem %s187, 1 [#allocation2]
    %v212 = vld [vmem:[%s211] ss:$2 sm:$0xff]
    %s213 = scalar_lea.vmem %s187, 49 [#allocation2]
    %v214 = vld [vmem:[%s213] ss:$2 sm:$0xff]
    %s215 = scalar_lea.vmem %s187, 97 [#allocation2]
    %v216 = vld [vmem:[%s215] ss:$2 sm:$0xff]
    %s217 = scalar_lea.vmem %s187, 145 [#allocation2]
    %v218 = vld [vmem:[%s217] ss:$2 sm:$0xff]
    %s219 = scalar_lea.vmem %s187, 193 [#allocation2]
    %v220 = vld [vmem:[%s219] ss:$2 sm:$0xff]
    %s221 = scalar_lea.vmem %s187, 241 [#allocation2]
    %v222 = vld [vmem:[%s221] ss:$2 sm:$0xff]
    %s223 = scalar_lea.vmem %s187, 289 [#allocation2]
    %v224 = vld [vmem:[%s223] ss:$2 sm:$0xff]
    %s225 = scalar_lea.vmem %s187, 337 [#allocation2]
    %v226 = vld [vmem:[%s225] ss:$2 sm:$0xff]
    %v227 = vmax.f32 %v203, %v212
    %v228 = vmax.f32 %v204, %v214
    %v229 = vmax.f32 %v205, %v216
    %v230 = vmax.f32 %v206, %v218
    %v231 = vmax.f32 %v207, %v220
    %v232 = vmax.f32 %v208, %v222
    %v233 = vmax.f32 %v209, %v224
    %v234 = vmax.f32 %v210, %v226
    %s235 = scalar_lea.vmem %s187, 2 [#allocation2]
    %v236 = vld [vmem:[%s235] ss:$2 sm:$0xff]
    %s237 = scalar_lea.vmem %s187, 50 [#allocation2]
    %v238 = vld [vmem:[%s237] ss:$2 sm:$0xff]
    %s239 = scalar_lea.vmem %s187, 98 [#allocation2]
    %v240 = vld [vmem:[%s239] ss:$2 sm:$0xff]
    %s241 = scalar_lea.vmem %s187, 146 [#allocation2]
    %v242 = vld [vmem:[%s241] ss:$2 sm:$0xff]
    %s243 = scalar_lea.vmem %s187, 194 [#allocation2]
    %v244 = vld [vmem:[%s243] ss:$2 sm:$0xff]
    %s245 = scalar_lea.vmem %s187, 242 [#allocation2]
    %v246 = vld [vmem:[%s245] ss:$2 sm:$0xff]
    %s247 = scalar_lea.vmem %s187, 290 [#allocation2]
    %v248 = vld [vmem:[%s247] ss:$2 sm:$0xff]
    %s249 = scalar_lea.vmem %s187, 338 [#allocation2]
    %v250 = vld [vmem:[%s249] ss:$2 sm:$0xff]
    %v251 = vmax.f32 %v227, %v236
    %v252 = vmax.f32 %v228, %v238
    %v253 = vmax.f32 %v229, %v240
    %v254 = vmax.f32 %v230, %v242
    %v255 = vmax.f32 %v231, %v244
    %v256 = vmax.f32 %v232, %v246
    %v257 = vmax.f32 %v233, %v248
    %v258 = vmax.f32 %v234, %v250
    %s259 = scalar_lea.vmem [#allocation2], 48
    %v260 = vld [vmem:[%s259] ss:$2 sm:$0xff]
    %s261 = scalar_lea.vmem %s259, 48 [#allocation2]
    %v262 = vld [vmem:[%s261] ss:$2 sm:$0xff]
    %s263 = scalar_lea.vmem %s259, 96 [#allocation2]
    %v264 = vld [vmem:[%s263] ss:$2 sm:$0xff]
    %s265 = scalar_lea.vmem %s259, 144 [#allocation2]
    %v266 = vld [vmem:[%s265] ss:$2 sm:$0xff]
    %s267 = scalar_lea.vmem %s259, 192 [#allocation2]
    %v268 = vld [vmem:[%s267] ss:$2 sm:$0xff]
    %s269 = scalar_lea.vmem %s259, 240 [#allocation2]
    %v270 = vld [vmem:[%s269] ss:$2 sm:$0xff]
    %s271 = scalar_lea.vmem %s259, 288 [#allocation2]
    %v272 = vld [vmem:[%s271] ss:$2 sm:$0xff]
    %s273 = scalar_lea.vmem %s259, 336 [#allocation2]
    %v274 = vld [vmem:[%s273] ss:$2 sm:$0xff]
    %v275 = vmax.f32 %v251, %v260
    %v276 = vmax.f32 %v252, %v262
    %v277 = vmax.f32 %v253, %v264
    %v278 = vmax.f32 %v254, %v266
    %v279 = vmax.f32 %v255, %v268
    %v280 = vmax.f32 %v256, %v270
    %v281 = vmax.f32 %v257, %v272
    %v282 = vmax.f32 %v258, %v274
    %s283 = scalar_lea.vmem %s259, 1 [#allocation2]
    %v284 = vld [vmem:[%s283] ss:$2 sm:$0xff]
    %s285 = scalar_lea.vmem %s259, 49 [#allocation2]
    %v286 = vld [vmem:[%s285] ss:$2 sm:$0xff]
    %s287 = scalar_lea.vmem %s259, 97 [#allocation2]
    %v288 = vld [vmem:[%s287] ss:$2 sm:$0xff]
    %s289 = scalar_lea.vmem %s259, 145 [#allocation2]
    %v290 = vld [vmem:[%s289] ss:$2 sm:$0xff]
    %s291 = scalar_lea.vmem %s259, 193 [#allocation2]
    %v292 = vld [vmem:[%s291] ss:$2 sm:$0xff]
    %s293 = scalar_lea.vmem %s259, 241 [#allocation2]
    %v294 = vld [vmem:[%s293] ss:$2 sm:$0xff]
    %s295 = scalar_lea.vmem %s259, 289 [#allocation2]
    %v296 = vld [vmem:[%s295] ss:$2 sm:$0xff]
    %s297 = scalar_lea.vmem %s259, 337 [#allocation2]
    %v298 = vld [vmem:[%s297] ss:$2 sm:$0xff]
    %v299 = vmax.f32 %v275, %v284
    %v300 = vmax.f32 %v276, %v286
    %v301 = vmax.f32 %v277, %v288
    %v302 = vmax.f32 %v278, %v290
    %v303 = vmax.f32 %v279, %v292
    %v304 = vmax.f32 %v280, %v294
    %v305 = vmax.f32 %v281, %v296
    %v306 = vmax.f32 %v282, %v298
    %s307 = scalar_lea.vmem %s259, 2 [#allocation2]
    %v308 = vld [vmem:[%s307] ss:$2 sm:$0xff]
    %s309 = scalar_lea.vmem %s259, 50 [#allocation2]
    %v310 = vld [vmem:[%s309] ss:$2 sm:$0xff]
    %s311 = scalar_lea.vmem %s259, 98 [#allocation2]
    %v312 = vld [vmem:[%s311] ss:$2 sm:$0xff]
    %s313 = scalar_lea.vmem %s259, 146 [#allocation2]
    %v314 = vld [vmem:[%s313] ss:$2 sm:$0xff]
    %s315 = scalar_lea.vmem %s259, 194 [#allocation2]
    %v316 = vld [vmem:[%s315] ss:$2 sm:$0xff]
    %s317 = scalar_lea.vmem %s259, 242 [#allocation2]
    %v318 = vld [vmem:[%s317] ss:$2 sm:$0xff]
    %s319 = scalar_lea.vmem %s259, 290 [#allocation2]
    %v320 = vld [vmem:[%s319] ss:$2 sm:$0xff]
    %s321 = scalar_lea.vmem %s259, 338 [#allocation2]
    %v322 = vld [vmem:[%s321] ss:$2 sm:$0xff]
    %v323 = vmax.f32 %v299, %v308
    %v324 = vmax.f32 %v300, %v310
    %v325 = vmax.f32 %v301, %v312
    %v326 = vmax.f32 %v302, %v314
    %v327 = vmax.f32 %v303, %v316
    %v328 = vmax.f32 %v304, %v318
    %v329 = vmax.f32 %v305, %v320
    %v330 = vmax.f32 %v306, %v322
    %331 = vst [vmem:[#allocation3] sm:$0xff] %v323
    %332 = vst [vmem:[#allocation3 + $0x8] sm:$0xff] %v324
    %333 = vst [vmem:[#allocation3 + $0x10] sm:$0xff] %v325
    %334 = vst [vmem:[#allocation3 + $0x18] sm:$0xff] %v326
    %335 = vst [vmem:[#allocation3 + $0x20] sm:$0xff] %v327
    %336 = vst [vmem:[#allocation3 + $0x28] sm:$0xff] %v328
    %337 = vst [vmem:[#allocation3 + $0x30] sm:$0xff] %v329
    %338 = vst [vmem:[#allocation3 + $0x38] sm:$0xff] %v330
    // Predicated region
    $region6: #{tpu_custom_call.1} parent=1 // pred_check
      _
    $region7: #{tpu_custom_call.1} parent=1 // pred_check_branch
      %340 = sbr.rel (0) target = $region9
    $region8: #{tpu_custom_call.1} parent=1 // pred_region
      %s342 = ssub.s32 1024, 1024
      %343 = vsyncadd [#allocation4], %s342
      %s344 = sshll.u32 [#allocation3], 4
      %s345 = int_to_ptr.vmem [resolvable:$true] %s344
      %350 = dma.vmem_to_hbm [thread:$0]  %s345, 1024, %s1, [#allocation4], 128, 128, 8
    $region9: #{tpu_custom_call.1} parent=1 // pred_fallthru
      _
    // Predicated region
    $region10: #{tpu_custom_call.1} parent=1 // pred_check
      _
    $region11: #{tpu_custom_call.1} parent=1 // pred_check_branch
      %352 = sbr.rel (0) target = $region13
    $region12: #{tpu_custom_call.1} parent=1 // pred_region
      %353 = dma.done [#allocation4], 1024
    $region13: #{tpu_custom_call.1} parent=1 // pred_fallthru
      _
    %354 = vsyncpa [#allocation4], 1

</llo_original>
